<compile_context>
chip_gen: v6e
topology: v6e:2x2x1
jax: 0.10.0
libtpu: 0.0.40
codegen_flags: <defaults>
</compile_context>

<pallas_src>
import functools

import jax
import jax.numpy as jnp
from jax.experimental import pallas as pl
from jax.experimental.pallas import tpu as pltpu


LANE = 128          # lane width: feature dims padded to a multiple of this
TILE_M = 1024       # max row (output-node) tile
TILE_K = 2048       # max contraction (neighbor-node) tile
VMEM_LIMIT = 48 * 1024 * 1024   # safe on v5e/v6e (128 MiB) and v7x (64 MiB)


def _round_up(x, m):
    return (x + m - 1) // m * m


def _pow2_tile(limit, upper):
    """Largest power-of-two multiple of LANE <= min(limit, upper), >= LANE."""
    cap = max(LANE, min(limit, upper))
    t = LANE
    while t * 2 <= cap:
        t *= 2
    return t


def _nbytes(a):
    return a.size * a.dtype.itemsize


def _sage_kernel(a_ref, xn_ref, xr_ref, dinv_ref, *refs, apply_relu, project_after):
    """One SAGEConv layer, tiled over (row tile i, contraction tile k).

    a_ref    : (TM, TK) bf16 neighbor-count block
    xn_ref   : (TK, Fn) bf16 features to aggregate (raw x or pre-projected x@W_l)
    xr_ref   : (TM, Fi) f32  root features
    dinv_ref : (TM, 1)  f32  reciprocal in-degree
    refs     : ([wl_ref,] wr_ref, b_ref, o_ref, acc_ref)
    """
    if project_after:
        wl_ref, wr_ref, b_ref, o_ref, acc_ref = refs
    else:
        wr_ref, b_ref, o_ref, acc_ref = refs

    k = pl.program_id(1)

    @pl.when(k == 0)
    def _init():
        acc_ref[...] = jnp.zeros_like(acc_ref)

    # Accumulate sum over in-neighbors: counts @ X.
    # bf16 x bf16 operands -> native MXU rate, f32 accumulation in VMEM scratch.
    acc_ref[...] += jnp.dot(a_ref[...], xn_ref[...],
                            preferred_element_type=jnp.float32)

    @pl.when(k == pl.num_programs(1) - 1)
    def _finalize():
        # mean = sum * (1 / in_degree); degree-0 rows carry dinv == 0.
        agg = acc_ref[...] * dinv_ref[...]
        if project_after:
            neigh = jnp.dot(agg, wl_ref[...], preferred_element_type=jnp.float32)
        else:
            neigh = agg  # features were pre-projected by W_l outside
        out = (neigh
               + jnp.dot(xr_ref[...], wr_ref[...],
                         preferred_element_type=jnp.float32)
               + b_ref[...])
        if apply_relu:
            out = jnp.maximum(out, 0.0)
        o_ref[...] = out.astype(o_ref.dtype)


def sage_conv(counts, inv_deg, x_n, x_r, w_l, w_r, b, *,
              apply_relu, project_after, tile_m, tile_k):
    """One SAGEConv layer on TPU via a tiled Pallas kernel.

    counts  : (Np, Np)  bf16   dense in-neighbor edge counts (padded)
    inv_deg : (Np, 1)   f32    1 / in_degree (0 where degree == 0)
    x_n     : (Np, Fn)  bf16   features to aggregate (padded lanes)
    x_r     : (Np, Fi)  f32    root features (padded lanes)
    w_l     : (Fi, Fo)  f32    (only used when project_after=True)
    w_r     : (Fi, Fo)  f32
    b       : (1, Fo)   f32
    """
    pn = counts.shape[0]
    fn = x_n.shape[1]
    fi = x_r.shape[1]
    fo = w_r.shape[1]
    assert pn % tile_m == 0 and pn % tile_k == 0
    assert counts.dtype == jnp.bfloat16 and x_n.dtype == jnp.bfloat16
    if not project_after:
        assert fn == fo, "pre-projected neighbor features must have width Fo"

    grid_i, grid_k = pn // tile_m, pn // tile_k
    grid = (grid_i, grid_k)
    kernel = functools.partial(_sage_kernel, apply_relu=apply_relu,
                               project_after=project_after)

    in_specs = [
        pl.BlockSpec((tile_m, tile_k), lambda i, k: (i, k)),  # counts block
        pl.BlockSpec((tile_k, fn), lambda i, k: (k, 0)),      # neighbor feats
        pl.BlockSpec((tile_m, fi), lambda i, k: (i, 0)),      # root feats
        pl.BlockSpec((tile_m, 1), lambda i, k: (i, 0)),       # 1/degree
    ]
    operands = [counts, x_n, x_r, inv_deg]
    if project_after:
        in_specs.append(pl.BlockSpec(w_l.shape, lambda i, k: (0, 0)))
        operands.append(w_l)
    in_specs += [
        pl.BlockSpec(w_r.shape, lambda i, k: (0, 0)),
        pl.BlockSpec(b.shape, lambda i, k: (0, 0)),
    ]
    operands += [w_r, b]

    flops = 2 * pn * pn * fn + 2 * pn * fn * fo + 2 * pn * fi * fo
    # counts streamed once; x_n re-streamed once per row tile; x_r / weights /
    # bias fetched once (their block index is constant along k); output written once.
    bytes_accessed = (_nbytes(counts)
                      + grid_i * _nbytes(x_n)
                      + _nbytes(x_r) + _nbytes(inv_deg)
                      + (_nbytes(w_l) if project_after else 0)
                      + _nbytes(w_r) + _nbytes(b)
                      + pn * fo * 4)
    cost = pl.CostEstimate(flops=flops, transcendentals=0,
                           bytes_accessed=bytes_accessed)

    return pl.pallas_call(
        kernel,
        out_shape=jax.ShapeDtypeStruct((pn, fo), jnp.float32),
        grid=grid,
        in_specs=in_specs,
        out_specs=pl.BlockSpec((tile_m, fo), lambda i, k: (i, 0)),
        scratch_shapes=[pltpu.VMEM((tile_m, fn), jnp.float32)],
        compiler_params=pltpu.CompilerParams(
            dimension_semantics=("parallel", "arbitrary"),
            vmem_limit_bytes=VMEM_LIMIT,
        ),
        cost_estimate=cost,
    )(*operands)


def build_mean_aggregation(edge_index, num_nodes, padded_n):
    """Dense in-neighbor counts (bf16, exact for <=256 parallel edges) and
    reciprocal in-degree (f32).  edge_index[0]=src, edge_index[1]=dst."""
    src, dst = edge_index[0], edge_index[1]
    counts = jnp.zeros((padded_n, padded_n), jnp.float32)
    counts = counts.at[dst, src].add(1.0)
    deg = counts.sum(axis=1, keepdims=True)
    inv_deg = jnp.where(deg > 0, 1.0 / jnp.maximum(deg, 1.0), 0.0)
    max_cnt = counts.max()
    if not isinstance(max_cnt, jax.core.Tracer):
        # bf16 represents integers exactly only up to 256.
        assert float(max_cnt) <= 256.0, (
            "multigraph has >256 parallel edges between a node pair; "
            "bf16 counts would lose edges")
    return counts.astype(jnp.bfloat16), inv_deg.astype(jnp.float32)


def _pad2d(a, rows, cols):
    return jnp.pad(a, ((0, rows - a.shape[0]), (0, cols - a.shape[1])))


def graphsage_forward(x, edge_index, params):
    """GraphSAGE forward: relu(SAGEConv1(x)) -> SAGEConv2."""
    n, in_c = x.shape
    hid_c = params["w1_l"].shape[1]
    out_c = params["w2_l"].shape[1]

    # --- tile & padding selection -------------------------------------------
    pn_lane = _round_up(n, LANE)
    tile_k = _pow2_tile(TILE_K, pn_lane)
    tile_m = _pow2_tile(TILE_M, pn_lane)
    pn = _round_up(n, max(tile_m, tile_k))
    # v7x has 2 TensorCores: make sure the "parallel" row axis has >=2 blocks
    # whenever the graph allows it (tile_m halving preserves divisibility).
    if pn // tile_m < 2 and tile_m > LANE:
        tile_m //= 2

    fi_p = _round_up(in_c, LANE)
    fh_p = _round_up(hid_c, LANE)
    fo_p = _round_up(out_c, LANE)

    counts, inv_deg = build_mean_aggregation(edge_index, n, pn)

    x_p = _pad2d(x.astype(jnp.float32), pn, fi_p)
    x_n = x_p.astype(jnp.bfloat16)          # streamed neighbor operand: bf16
    w1_l = _pad2d(params["w1_l"], fi_p, fh_p)
    w1_r = _pad2d(params["w1_r"], fi_p, fh_p)
    b1 = _pad2d(params["b1"], 1, fh_p)
    w2_l = _pad2d(params["w2_l"], fh_p, fo_p)
    w2_r = _pad2d(params["w2_r"], fh_p, fo_p)
    b2 = _pad2d(params["b2"], 1, fo_p)

    # Layer 1: F_in <= F_out -> aggregate raw features, project after.
    h = sage_conv(counts, inv_deg, x_n, x_p, w1_l, w1_r, b1,
                  apply_relu=True, project_after=True,
                  tile_m=tile_m, tile_k=tile_k)

    # Layer 2: F_in > F_out -> reorder to A @ (X @ W_l): pre-project the
    # features (tiny O(N*F^2) matmul, JAX glue) and aggregate the projection.
    h_proj = jnp.dot(h, w2_l, preferred_element_type=jnp.float32)
    out_p = sage_conv(counts, inv_deg, h_proj.astype(jnp.bfloat16), h,
                      None, w2_r, b2,
                      apply_relu=False, project_after=False,
                      tile_m=tile_m, tile_k=tile_k)

    return out_p[:n, :out_c]


def init_params(key, in_channels, hidden_channels, out_channels):
    ks = jax.random.split(key, 6)
    s1 = 1.0 / jnp.sqrt(in_channels)
    s2 = 1.0 / jnp.sqrt(hidden_channels)
    return {
        # stored as (F_in, F_out), i.e. already transposed vs torch Linear
        "w1_l": jax.random.uniform(ks[0], (in_channels, hidden_channels),
                                   jnp.float32, -s1, s1),
        "w1_r": jax.random.uniform(ks[1], (in_channels, hidden_channels),
                                   jnp.float32, -s1, s1),
        "b1": jax.random.uniform(ks[2], (1, hidden_channels),
                                 jnp.float32, -s1, s1),
        "w2_l": jax.random.uniform(ks[3], (hidden_channels, out_channels),
                                   jnp.float32, -s2, s2),
        "w2_r": jax.random.uniform(ks[4], (hidden_channels, out_channels),
                                   jnp.float32, -s2, s2),
        "b2": jax.random.uniform(ks[5], (1, out_channels),
                                 jnp.float32, -s2, s2),
    }


def graphsage_reference(x, edge_index, params):
    """Pure-JAX full-f32 reference with the original (A@X)@W ordering."""
    n = x.shape[0]
    src, dst = edge_index[0], edge_index[1]
    adj = jnp.zeros((n, n), jnp.float32).at[dst, src].add(1.0)
    deg = adj.sum(axis=1, keepdims=True)
    a = adj / jnp.maximum(deg, 1.0)

    def mm(u, v):
        return jnp.dot(u, v, precision=jax.lax.Precision.HIGHEST)

    def layer(xx, wl, wr, b):
        return mm(mm(a, xx), wl) + mm(xx, wr) + b

    h = jnp.maximum(layer(x, params["w1_l"], params["w1_r"], params["b1"]), 0.0)
    return layer(h, params["w2_l"], params["w2_r"], params["b2"])


if __name__ == "__main__":
    num_nodes = 16
    num_edges = 48
    in_channels, hidden_channels, out_channels = 8, 32, 16

    key = jax.random.PRNGKey(0)
    k_x, k_src, k_dst, k_p = jax.random.split(key, 4)

    x = jax.random.normal(k_x, (num_nodes, in_channels), jnp.float32)
    src = jax.random.randint(k_src, (num_edges,), 0, num_nodes, jnp.int32)
    dst = jax.random.randint(k_dst, (num_edges,), 0, num_nodes, jnp.int32)
    edge_index = jnp.stack([src, dst], axis=0)  # (2, E)

    params = init_params(k_p, in_channels, hidden_channels, out_channels)

    out = graphsage_forward(x, edge_index, params)
    out = jax.block_until_ready(out)

    ref = graphsage_reference(x, edge_index, params)
    assert out.shape == (num_nodes, out_channels)
    # Neighbor features are stored / contracted in bf16 (matches the MXU's
    # default-precision behaviour), so compare against the f32 reference at
    # bf16-level tolerance.
    err = float(jnp.max(jnp.abs(out - ref)))
    assert jnp.allclose(out, ref, atol=2e-2, rtol=2e-2), err

    print("KERNEL_OK")
</pallas_src>

<mosaic_0001>
module attributes {stable_mosaic.version = 11 : i64} {
  func.func @_sage_kernel(%arg0: i32, %arg1: i32, %arg2: memref<128x128xbf16, #tpu.memory_space<vmem>>, %arg3: memref<128x128xbf16, #tpu.memory_space<vmem>>, %arg4: memref<128x128xf32, #tpu.memory_space<vmem>>, %arg5: memref<128x1xf32, #tpu.memory_space<vmem>>, %arg6: memref<128x128xf32, #tpu.memory_space<vmem>>, %arg7: memref<128x128xf32, #tpu.memory_space<vmem>>, %arg8: memref<1x128xf32, #tpu.memory_space<vmem>>, %arg9: memref<128x128xf32, #tpu.memory_space<vmem>>, %arg10: memref<128x128xf32, #tpu.memory_space<vmem>>) attributes {dimension_semantics = [#tpu.dimension_semantics<parallel>, #tpu.dimension_semantics<arbitrary>], iteration_bounds = array<i64: 1, 1>, scalar_prefetch = 0 : i64, scratch_operands = 1 : i64, tpu.core_type = #tpu.core_type<tc>, window_params = [{transform_indices = @transform_0, window_bounds = array<i64: 128, 128>}, {transform_indices = @transform_1, window_bounds = array<i64: 128, 128>}, {transform_indices = @transform_2, window_bounds = array<i64: 128, 128>}, {transform_indices = @transform_3, window_bounds = array<i64: 128, 1>}, {pipeline_mode = #tpu.pipeline_mode<synchronous>, transform_indices = @transform_4, window_bounds = array<i64: 128, 128>}, {pipeline_mode = #tpu.pipeline_mode<synchronous>, transform_indices = @transform_5, window_bounds = array<i64: 128, 128>}, {pipeline_mode = #tpu.pipeline_mode<synchronous>, transform_indices = @transform_6, window_bounds = array<i64: 1, 128>}, {transform_indices = @transform_7, window_bounds = array<i64: 128, 128>}]} {
    %c0_i32 = arith.constant 0 : i32
    %0 = arith.cmpi eq, %arg1, %c0_i32 : i32
    %1 = arith.extui %0 : i1 to i32
    %c0_i32_0 = arith.constant 0 : i32
    %2 = arith.cmpi ne, %1, %c0_i32_0 : i32
    scf.if %2 {
      %cst_10 = arith.constant 0.000000e+00 : f32
      %12 = vector.broadcast %cst_10 : f32 to vector<128x128xf32>
      %c0_11 = arith.constant 0 : index
      %c0_12 = arith.constant 0 : index
      %13 = vector.load %arg10[%c0_11, %c0_12] : memref<128x128xf32, #tpu.memory_space<vmem>>, vector<128x128xf32>
      tpu.vector_store %arg10[%c0_11, %c0_12], %12 {strides = array<i32>} : memref<128x128xf32, #tpu.memory_space<vmem>>, vector<128x128xf32>,
    } else {
    }
    %c0 = arith.constant 0 : index
    %c0_1 = arith.constant 0 : index
    %3 = vector.load %arg10[%c0, %c0_1] : memref<128x128xf32, #tpu.memory_space<vmem>>, vector<128x128xf32>
    %c0_2 = arith.constant 0 : index
    %c0_3 = arith.constant 0 : index
    %4 = vector.load %arg2[%c0_2, %c0_3] : memref<128x128xbf16, #tpu.memory_space<vmem>>, vector<128x128xbf16>
    %c0_4 = arith.constant 0 : index
    %c0_5 = arith.constant 0 : index
    %5 = vector.load %arg3[%c0_4, %c0_5] : memref<128x128xbf16, #tpu.memory_space<vmem>>, vector<128x128xbf16>
    %cst = arith.constant dense<0.000000e+00> : vector<128x128xf32>
    %6 = tpu.matmul %4, %5, %cst {dimension_numbers = #tpu.dot_dimension_numbers<[1], [0], [0], [1], [0, 0, 1, 1], [], []>} : vector<128x128xbf16>, vector<128x128xbf16>, vector<128x128xf32> -> vector<128x128xf32>
    %7 = arith.addf %3, %6 : vector<128x128xf32>
    %c0_6 = arith.constant 0 : index
    %c0_7 = arith.constant 0 : index
    %8 = vector.load %arg10[%c0_6, %c0_7] : memref<128x128xf32, #tpu.memory_space<vmem>>, vector<128x128xf32>
    tpu.vector_store %arg10[%c0_6, %c0_7], %7 {strides = array<i32>} : memref<128x128xf32, #tpu.memory_space<vmem>>, vector<128x128xf32>,
    %c0_i32_8 = arith.constant 0 : i32
    %9 = arith.cmpi eq, %arg1, %c0_i32_8 : i32
    %10 = arith.extui %9 : i1 to i32
    %c0_i32_9 = arith.constant 0 : i32
    %11 = arith.cmpi ne, %10, %c0_i32_9 : i32
    scf.if %11 {
      %c0_10 = arith.constant 0 : index
      %c0_11 = arith.constant 0 : index
      %12 = vector.load %arg10[%c0_10, %c0_11] : memref<128x128xf32, #tpu.memory_space<vmem>>, vector<128x128xf32>
      %c0_12 = arith.constant 0 : index
      %c0_13 = arith.constant 0 : index
      %13 = vector.load %arg5[%c0_12, %c0_13] : memref<128x1xf32, #tpu.memory_space<vmem>>, vector<128x1xf32>
      %14 = vector.broadcast %13 : vector<128x1xf32> to vector<128x128xf32>
      %15 = arith.mulf %12, %14 : vector<128x128xf32>
      %c0_14 = arith.constant 0 : index
      %c0_15 = arith.constant 0 : index
      %16 = vector.load %arg6[%c0_14, %c0_15] : memref<128x128xf32, #tpu.memory_space<vmem>>, vector<128x128xf32>
      %cst_16 = arith.constant dense<0.000000e+00> : vector<128x128xf32>
      %17 = tpu.matmul %15, %16, %cst_16 {dimension_numbers = #tpu.dot_dimension_numbers<[1], [0], [0], [1], [0, 0, 1, 1], [], []>} : vector<128x128xf32>, vector<128x128xf32>, vector<128x128xf32> -> vector<128x128xf32>
      %c0_17 = arith.constant 0 : index
      %c0_18 = arith.constant 0 : index
      %18 = vector.load %arg4[%c0_17, %c0_18] : memref<128x128xf32, #tpu.memory_space<vmem>>, vector<128x128xf32>
      %c0_19 = arith.constant 0 : index
      %c0_20 = arith.constant 0 : index
      %19 = vector.load %arg7[%c0_19, %c0_20] : memref<128x128xf32, #tpu.memory_space<vmem>>, vector<128x128xf32>
      %cst_21 = arith.constant dense<0.000000e+00> : vector<128x128xf32>
      %20 = tpu.matmul %18, %19, %cst_21 {dimension_numbers = #tpu.dot_dimension_numbers<[1], [0], [0], [1], [0, 0, 1, 1], [], []>} : vector<128x128xf32>, vector<128x128xf32>, vector<128x128xf32> -> vector<128x128xf32>
      %21 = arith.addf %17, %20 : vector<128x128xf32>
      %c0_22 = arith.constant 0 : index
      %c0_23 = arith.constant 0 : index
      %22 = vector.load %arg8[%c0_22, %c0_23] : memref<1x128xf32, #tpu.memory_space<vmem>>, vector<1x128xf32>
      %23 = vector.broadcast %22 : vector<1x128xf32> to vector<128x128xf32>
      %24 = arith.addf %21, %23 : vector<128x128xf32>
      %cst_24 = arith.constant 0.000000e+00 : f32
      %25 = vector.broadcast %cst_24 : f32 to vector<128x128xf32>
      %26 = arith.maximumf %24, %25 : vector<128x128xf32>
      %c0_25 = arith.constant 0 : index
      %c0_26 = arith.constant 0 : index
      %27 = vector.load %arg9[%c0_25, %c0_26] : memref<128x128xf32, #tpu.memory_space<vmem>>, vector<128x128xf32>
      tpu.vector_store %arg9[%c0_25, %c0_26], %26 {strides = array<i32>} : memref<128x128xf32, #tpu.memory_space<vmem>>, vector<128x128xf32>,
    } else {
    }
    return
  }
  func.func @transform_0(%arg0: i32, %arg1: i32) -> (i32, i32) {
    %c0_i32 = arith.constant 0 : i32
    return %arg0, %arg1 : i32, i32
  }
  func.func @transform_1(%arg0: i32, %arg1: i32) -> (i32, i32) {
    %c0_i32 = arith.constant 0 : i32
    %c0_i32_0 = arith.constant 0 : i32
    return %arg1, %c0_i32 : i32, i32
  }
  func.func @transform_2(%arg0: i32, %arg1: i32) -> (i32, i32) {
    %c0_i32 = arith.constant 0 : i32
    %c0_i32_0 = arith.constant 0 : i32
    return %arg0, %c0_i32 : i32, i32
  }
  func.func @transform_3(%arg0: i32, %arg1: i32) -> (i32, i32) {
    %c0_i32 = arith.constant 0 : i32
    %c0_i32_0 = arith.constant 0 : i32
    return %arg0, %c0_i32 : i32, i32
  }
  func.func @transform_4(%arg0: i32, %arg1: i32) -> (i32, i32) {
    %c0_i32 = arith.constant 0 : i32
    %c0_i32_0 = arith.constant 0 : i32
    %c0_i32_1 = arith.constant 0 : i32
    return %c0_i32, %c0_i32_0 : i32, i32
  }
  func.func @transform_5(%arg0: i32, %arg1: i32) -> (i32, i32) {
    %c0_i32 = arith.constant 0 : i32
    %c0_i32_0 = arith.constant 0 : i32
    %c0_i32_1 = arith.constant 0 : i32
    return %c0_i32, %c0_i32_0 : i32, i32
  }
  func.func @transform_6(%arg0: i32, %arg1: i32) -> (i32, i32) {
    %c0_i32 = arith.constant 0 : i32
    %c0_i32_0 = arith.constant 0 : i32
    %c0_i32_1 = arith.constant 0 : i32
    return %c0_i32, %c0_i32_0 : i32, i32
  }
  func.func @transform_7(%arg0: i32, %arg1: i32) -> (i32, i32) {
    %c0_i32 = arith.constant 0 : i32
    %c0_i32_0 = arith.constant 0 : i32
    return %arg0, %c0_i32 : i32, i32
  }
}

</mosaic_0001>

<llo_original>
// kernel: tpu_custom_call.1
$region0: #{tpu_custom_call.1}
  #allocation0 [shape = 'u32[]', space=smem, size = 0x4, offset = 0x4, fixed_abs, tag = 'smem constant byte address 0x4 - core index']
  #allocation1 [shape = 'u32[144,128]{1,0:T(1,128)}', space=vmem, size = 0x12000, scoped, tag = 'internal scratch']
  #allocation2 [shape = 'f32[128,128]{1,0:T(8,128)}', space=vmem, size = 0x10000, scoped, tag = 'scratch operand']
  %s0 = inlined_call_operand.hbm [shape: bf16[128,128], index: 0, kind: input, shape index: {}]
  %s1 = inlined_call_operand.hbm [shape: bf16[128,128], index: 1, kind: input, shape index: {}]
  %s2 = inlined_call_operand.vmem [shape: f32[128,128], index: 2, kind: input, shape index: {}]
  %s3 = inlined_call_operand.vmem [shape: f32[128,1], index: 3, kind: input, shape index: {}]
  %s4 = inlined_call_operand.hbm [shape: f32[128,128], index: 4, kind: input, shape index: {}]
  %s5 = inlined_call_operand.hbm [shape: f32[128,128], index: 5, kind: input, shape index: {}]
  %s6 = inlined_call_operand.vmem [shape: f32[1,128], index: 6, kind: input, shape index: {}]
  %s7 = inlined_call_operand.hbm [shape: f32[128,128], index: 7, kind: output, shape index: {}]
  %s8 = sld [smem:[#allocation0]]
  $region62: #{tpu_custom_call.1} parent=0
    _
  %s10 = ssub.s32 1, %s8
  %s11 = scalar_select 0, %s10, %s8
  $region1: #{tpu_custom_call.1} parent=0
    #allocation3 [shape = 'u8[32768]{0}', space=vmem, size = 0x8000, scoped, tag = 'input window, operand 0, single buffered']
    #allocation4 [shape = 's32[1]{0}', space=sflag, size = 0x4, scoped, tag = 'scoped memory for tpu_custom_call.1']
    #allocation5 [shape = 's32[1]{0}', space=sflag, size = 0x4, scoped, tag = 'scoped memory for tpu_custom_call.1']
    #allocation6 [shape = 'u8[32768]{0}', space=vmem, size = 0x8000, scoped, tag = 'input window, operand 1, single buffered']
    #allocation7 [shape = 's32[1]{0}', space=sflag, size = 0x4, scoped, tag = 'scoped memory for tpu_custom_call.1']
    #allocation8 [shape = 'u8[65536]{0}', space=vmem, size = 0x10000, scoped, tag = 'input window, operand 4, single buffered']
    #allocation9 [shape = 'u8[65536]{0}', space=vmem, size = 0x10000, scoped, tag = 'input window, operand 5, single buffered']
    #allocation10 [shape = 's32[1]{0}', space=sflag, size = 0x4, scoped, tag = 'scoped memory for tpu_custom_call.1']
    #allocation11 [shape = 'u8[65536]{0}', space=vmem, size = 0x10000, scoped, tag = 'output window, operand 0, single buffered']
    %12 = vsyncpa [#allocation4], 0
    %13 = vsyncpa [#allocation7], 0
    %14 = vsyncpa [#allocation10], 0
    %15 = vsyncpa [#allocation5], 0
    // Predicated region
    $region2: #{tpu_custom_call.1} parent=1 // pred_check
      _
    $region3: #{tpu_custom_call.1} parent=1 // pred_check_branch
      %17 = sbr.rel (0) target = $region5
    $region4: #{tpu_custom_call.1} parent=1 // pred_region
      %s19 = ssub.s32 1024, 1024
      %20 = vsyncadd [#allocation4], %s19
      %s21 = sshll.u32 [#allocation3], 4
      %s22 = int_to_ptr.vmem [resolvable:$true] %s21
      %27 = dma.hbm_to_vmem [thread:$0]  %s0, 1024, %s22, [#allocation4], 64, 64, 4
    $region5: #{tpu_custom_call.1} parent=1 // pred_fallthru
      _
    // Predicated region
    $region6: #{tpu_custom_call.1} parent=1 // pred_check
      _
    $region7: #{tpu_custom_call.1} parent=1 // pred_check_branch
      %29 = sbr.rel (0) target = $region9
    $region8: #{tpu_custom_call.1} parent=1 // pred_region
      %s31 = ssub.s32 1024, 1024
      %32 = vsyncadd [#allocation7], %s31
      %s33 = sshll.u32 [#allocation6], 4
      %s34 = int_to_ptr.vmem [resolvable:$true] %s33
      %39 = dma.hbm_to_vmem [thread:$0]  %s1, 1024, %s34, [#allocation7], 64, 64, 4
    $region9: #{tpu_custom_call.1} parent=1 // pred_fallthru
      _
    // Predicated region
    $region10: #{tpu_custom_call.1} parent=1 // pred_check
      _
    $region11: #{tpu_custom_call.1} parent=1 // pred_check_branch
      %41 = sbr.rel (0) target = $region13
    $region12: #{tpu_custom_call.1} parent=1 // pred_region
      _
    $region13: #{tpu_custom_call.1} parent=1 // pred_fallthru
      _
    // Predicated region
    $region14: #{tpu_custom_call.1} parent=1 // pred_check
      _
    $region15: #{tpu_custom_call.1} parent=1 // pred_check_branch
      %43 = sbr.rel (0) target = $region17
    $region16: #{tpu_custom_call.1} parent=1 // pred_region
      _
    $region17: #{tpu_custom_call.1} parent=1 // pred_fallthru
      _
    // Predicated region
    $region18: #{tpu_custom_call.1} parent=1 // pred_check
      _
    $region19: #{tpu_custom_call.1} parent=1 // pred_check_branch
      %45 = sbr.rel (0) target = $region21
    $region20: #{tpu_custom_call.1} parent=1 // pred_region
      %s47 = ssub.s32 2048, 2048
      %48 = vsyncadd [#allocation7], %s47
      %s49 = sshll.u32 [#allocation8], 4
      %s50 = int_to_ptr.vmem [resolvable:$true] %s49
      %55 = dma.hbm_to_vmem [thread:$0]  %s4, 2048, %s50, [#allocation7], 128, 128, 8
    $region21: #{tpu_custom_call.1} parent=1 // pred_fallthru
      _
    // Predicated region
    $region22: #{tpu_custom_call.1} parent=1 // pred_check
      _
    $region23: #{tpu_custom_call.1} parent=1 // pred_check_branch
      %57 = sbr.rel (0) target = $region25
    $region24: #{tpu_custom_call.1} parent=1 // pred_region
      %s59 = ssub.s32 2048, 2048
      %60 = vsyncadd [#allocation10], %s59
      %s61 = sshll.u32 [#allocation9], 4
      %s62 = int_to_ptr.vmem [resolvable:$true] %s61
      %67 = dma.hbm_to_vmem [thread:$0]  %s5, 2048, %s62, [#allocation10], 128, 128, 8
    $region25: #{tpu_custom_call.1} parent=1 // pred_fallthru
      _
    // Predicated region
    $region26: #{tpu_custom_call.1} parent=1 // pred_check
      _
    $region27: #{tpu_custom_call.1} parent=1 // pred_check_branch
      %69 = sbr.rel (0) target = $region29
    $region28: #{tpu_custom_call.1} parent=1 // pred_region
      _
    $region29: #{tpu_custom_call.1} parent=1 // pred_fallthru
      _
    // Predicated region
    $region30: #{tpu_custom_call.1} parent=1 // pred_check
      _
    $region31: #{tpu_custom_call.1} parent=1 // pred_check_branch
      %71 = sbr.rel (0) target = $region33
    $region32: #{tpu_custom_call.1} parent=1 // pred_region
      %72 = dma.done [#allocation4], 1024
    $region33: #{tpu_custom_call.1} parent=1 // pred_fallthru
      _
    // Predicated region
    $region34: #{tpu_custom_call.1} parent=1 // pred_check
      _
    $region35: #{tpu_custom_call.1} parent=1 // pred_check_branch
      %74 = sbr.rel (0) target = $region37
    $region36: #{tpu_custom_call.1} parent=1 // pred_region
      %75 = dma.done [#allocation7], 1024
    $region37: #{tpu_custom_call.1} parent=1 // pred_fallthru
      _
    // Predicated region
    $region38: #{tpu_custom_call.1} parent=1 // pred_check
      _
    $region39: #{tpu_custom_call.1} parent=1 // pred_check_branch
      %77 = sbr.rel (0) target = $region41
    $region40: #{tpu_custom_call.1} parent=1 // pred_region
      %78 = dma.done [#allocation7], 2048
    $region41: #{tpu_custom_call.1} parent=1 // pred_fallthru
      _
    // Predicated region
    $region42: #{tpu_custom_call.1} parent=1 // pred_check
      _
    $region43: #{tpu_custom_call.1} parent=1 // pred_check_branch
      %80 = sbr.rel (0) target = $region45
    $region44: #{tpu_custom_call.1} parent=1 // pred_region
      %81 = dma.done [#allocation10], 2048
    $region45: #{tpu_custom_call.1} parent=1 // pred_fallthru
      _
    %p83 = scmp.eq.s32.totalorder 0, 0
    // Predicated region
    $region46: #{tpu_custom_call.1} parent=1 // pred_check
      %p84 = pneg %p83
    $region47: #{tpu_custom_call.1} parent=1 // pred_check_branch
      %86 = sbr.rel (%p84) target = $region49
    $region48: #{tpu_custom_call.1} parent=1 // pred_region
      %87 = vst [vmem:[#allocation2] sm:$0xff] 0.0
      %88 = vst [vmem:[#allocation2 + $0x8] sm:$0xff] 0.0
      %89 = vst [vmem:[#allocation2 + $0x10] sm:$0xff] 0.0
      %90 = vst [vmem:[#allocation2 + $0x18] sm:$0xff] 0.0
      %91 = vst [vmem:[#allocation2 + $0x20] sm:$0xff] 0.0
      %92 = vst [vmem:[#allocation2 + $0x28] sm:$0xff] 0.0
      %93 = vst [vmem:[#allocation2 + $0x30] sm:$0xff] 0.0
      %94 = vst [vmem:[#allocation2 + $0x38] sm:$0xff] 0.0
      %95 = vst [vmem:[#allocation2 + $0x40] sm:$0xff] 0.0
      %96 = vst [vmem:[#allocation2 + $0x48] sm:$0xff] 0.0
      %97 = vst [vmem:[#allocation2 + $0x50] sm:$0xff] 0.0
      %98 = vst [vmem:[#allocation2 + $0x58] sm:$0xff] 0.0
      %99 = vst [vmem:[#allocation2 + $0x60] sm:$0xff] 0.0
      %100 = vst [vmem:[#allocation2 + $0x68] sm:$0xff] 0.0
      %101 = vst [vmem:[#allocation2 + $0x70] sm:$0xff] 0.0
      %102 = vst [vmem:[#allocation2 + $0x78] sm:$0xff] 0.0
    $region49: #{tpu_custom_call.1} parent=1 // pred_fallthru
      _
    %v103 = vld [vmem:[#allocation2] sm:$0xff]
    %v104 = vld [vmem:[#allocation2 + $0x8] sm:$0xff]
    %v105 = vld [vmem:[#allocation2 + $0x10] sm:$0xff]
    %v106 = vld [vmem:[#allocation2 + $0x18] sm:$0xff]
    %v107 = vld [vmem:[#allocation2 + $0x20] sm:$0xff]
    %v108 = vld [vmem:[#allocation2 + $0x28] sm:$0xff]
    %v109 = vld [vmem:[#allocation2 + $0x30] sm:$0xff]
    %v110 = vld [vmem:[#allocation2 + $0x38] sm:$0xff]
    %v111 = vld [vmem:[#allocation2 + $0x40] sm:$0xff]
    %v112 = vld [vmem:[#allocation2 + $0x48] sm:$0xff]
    %v113 = vld [vmem:[#allocation2 + $0x50] sm:$0xff]
    %v114 = vld [vmem:[#allocation2 + $0x58] sm:$0xff]
    %v115 = vld [vmem:[#allocation2 + $0x60] sm:$0xff]
    %v116 = vld [vmem:[#allocation2 + $0x68] sm:$0xff]
    %v117 = vld [vmem:[#allocation2 + $0x70] sm:$0xff]
    %v118 = vld [vmem:[#allocation2 + $0x78] sm:$0xff]
    %v119 = vld [vmem:[#allocation3] sm:$0xf]
    %v120 = vld [vmem:[#allocation3 + $0x4] sm:$0xf]
    %v121 = vld [vmem:[#allocation3 + $0x8] sm:$0xf]
    %v122 = vld [vmem:[#allocation3 + $0xc] sm:$0xf]
    %v123 = vld [vmem:[#allocation3 + $0x10] sm:$0xf]
    %v124 = vld [vmem:[#allocation3 + $0x14] sm:$0xf]
    %v125 = vld [vmem:[#allocation3 + $0x18] sm:$0xf]
    %v126 = vld [vmem:[#allocation3 + $0x1c] sm:$0xf]
    %v127 = vld [vmem:[#allocation3 + $0x20] sm:$0xf]
    %v128 = vld [vmem:[#allocation3 + $0x24] sm:$0xf]
    %v129 = vld [vmem:[#allocation3 + $0x28] sm:$0xf]
    %v130 = vld [vmem:[#allocation3 + $0x2c] sm:$0xf]
    %v131 = vld [vmem:[#allocation3 + $0x30] sm:$0xf]
    %v132 = vld [vmem:[#allocation3 + $0x34] sm:$0xf]
    %v133 = vld [vmem:[#allocation3 + $0x38] sm:$0xf]
    %v134 = vld [vmem:[#allocation3 + $0x3c] sm:$0xf]
    %v135 = vld [vmem:[#allocation6] sm:$0xf]
    %v136 = vld [vmem:[#allocation6 + $0x4] sm:$0xf]
    %v137 = vld [vmem:[#allocation6 + $0x8] sm:$0xf]
    %v138 = vld [vmem:[#allocation6 + $0xc] sm:$0xf]
    %v139 = vld [vmem:[#allocation6 + $0x10] sm:$0xf]
    %v140 = vld [vmem:[#allocation6 + $0x14] sm:$0xf]
    %v141 = vld [vmem:[#allocation6 + $0x18] sm:$0xf]
    %v142 = vld [vmem:[#allocation6 + $0x1c] sm:$0xf]
    %v143 = vld [vmem:[#allocation6 + $0x20] sm:$0xf]
    %v144 = vld [vmem:[#allocation6 + $0x24] sm:$0xf]
    %v145 = vld [vmem:[#allocation6 + $0x28] sm:$0xf]
    %v146 = vld [vmem:[#allocation6 + $0x2c] sm:$0xf]
    %v147 = vld [vmem:[#allocation6 + $0x30] sm:$0xf]
    %v148 = vld [vmem:[#allocation6 + $0x34] sm:$0xf]
    %v149 = vld [vmem:[#allocation6 + $0x38] sm:$0xf]
    %v150 = vld [vmem:[#allocation6 + $0x3c] sm:$0xf]
    %v167 = vunpack.c.l.b16 %v119
    %v168 = vunpack.c.l.b16 %v120
    %v169 = vunpack.c.l.b16 %v121
    %v170 = vunpack.c.l.b16 %v122
    %v171 = vunpack.c.l.b16 %v123
    %v172 = vunpack.c.l.b16 %v124
    %v173 = vunpack.c.l.b16 %v125
    %v174 = vunpack.c.l.b16 %v126
    %v175 = vunpack.c.l.b16 %v127
    %v176 = vunpack.c.l.b16 %v128
    %v177 = vunpack.c.l.b16 %v129
    %v178 = vunpack.c.l.b16 %v130
    %v179 = vunpack.c.l.b16 %v131
    %v180 = vunpack.c.l.b16 %v132
    %v181 = vunpack.c.l.b16 %v133
    %v182 = vunpack.c.l.b16 %v134
    %v183 = vpack.c.b16 %v168, %v167
    %v184 = vpack.c.b16 %v170, %v169
    %v185 = vpack.c.b16 %v172, %v171
    %v186 = vpack.c.b16 %v174, %v173
    %v187 = vpack.c.b16 %v176, %v175
    %v188 = vpack.c.b16 %v178, %v177
    %v189 = vpack.c.b16 %v180, %v179
    %v190 = vpack.c.b16 %v182, %v181
    %v215 = vunpack.c.l.b16 %v135
    %v216 = vunpack.c.l.b16 %v136
    %v217 = vunpack.c.l.b16 %v137
    %v218 = vunpack.c.l.b16 %v138
    %v219 = vunpack.c.l.b16 %v139
    %v220 = vunpack.c.l.b16 %v140
    %v221 = vunpack.c.l.b16 %v141
    %v222 = vunpack.c.l.b16 %v142
    %v223 = vunpack.c.l.b16 %v143
    %v224 = vunpack.c.l.b16 %v144
    %v225 = vunpack.c.l.b16 %v145
    %v226 = vunpack.c.l.b16 %v146
    %v227 = vunpack.c.l.b16 %v147
    %v228 = vunpack.c.l.b16 %v148
    %v229 = vunpack.c.l.b16 %v149
    %v230 = vunpack.c.l.b16 %v150
    %v231 = vpack.c.b16 %v216, %v215
    %v232 = vpack.c.b16 %v218, %v217
    %v233 = vpack.c.b16 %v220, %v219
    %v234 = vpack.c.b16 %v222, %v221
    %v235 = vpack.c.b16 %v224, %v223
    %v236 = vpack.c.b16 %v226, %v225
    %v237 = vpack.c.b16 %v228, %v227
    %v238 = vpack.c.b16 %v230, %v229
    %247 = vmatprep.subr.bf16.mxu0 0
    %248 = vmatpush1.bf16.msra.mxu0 %v238
    %249 = vmatprep.subr.bf16.mxu0 0
    %250 = vmatpush1.bf16.msra.mxu0 %v237
    %251 = vmatprep.subr.bf16.mxu0 0
    %252 = vmatpush1.bf16.msra.mxu0 %v236
    %253 = vmatprep.subr.bf16.mxu0 0
    %254 = vmatpush1.bf16.msra.mxu0 %v235
    %255 = vmatprep.subr.bf16.mxu0 0
    %256 = vmatpush1.bf16.msra.mxu0 %v234
    %257 = vmatprep.subr.bf16.mxu0 0
    %258 = vmatpush1.bf16.msra.mxu0 %v233
    %259 = vmatprep.subr.bf16.mxu0 0
    %260 = vmatpush1.bf16.msra.mxu0 %v232
    %261 = vmatprep.subr.bf16.mxu0 0
    %262 = vmatpush1.bf16.msra.mxu0 %v231
    %263 = vmatprep.subr.bf16.mxu0 0
    %264 = vmatpush2.bf16.msra.mxu0 0
    %265 = vmatprep.subr.bf16.mxu0 0
    %266 = vmatpush2.bf16.msra.mxu0 0
    %267 = vmatprep.subr.bf16.mxu0 0
    %268 = vmatpush2.bf16.msra.mxu0 0
    %269 = vmatprep.subr.bf16.mxu0 0
    %270 = vmatpush2.bf16.msra.mxu0 0
    %271 = vmatprep.subr.bf16.mxu0 0
    %272 = vmatpush2.bf16.msra.mxu0 0
    %273 = vmatprep.subr.bf16.mxu0 0
    %274 = vmatpush2.bf16.msra.mxu0 0
    %275 = vmatprep.subr.bf16.mxu0 0
    %276 = vmatpush2.bf16.msra.mxu0 0
    %277 = vmatprep.subr.bf16.mxu0 0
    %278 = vmatpush2.bf16.msra.mxu0 0
    %279 = vmatprep.mubr.bf16.mxu0 0
    %280 = vmatmul.mubr.bf16.gmra.mxu0 %v183
    %v281 = vpop.f32.mrf.mxu0
    %v282 = vadd.f32 0.0, %v281
    %v283 = vpop.f32.mrf.mxu0
    %v284 = vpop.f32.mrf.mxu0
    %v285 = vadd.f32 0.0, %v284
    %v286 = vpop.f32.mrf.mxu0
    %287 = vmatprep.mubr.bf16.mxu0 0
    %288 = vmatmul.mubr.bf16.gmra.mxu0 %v184
    %v289 = vpop.f32.mrf.mxu0
    %v290 = vadd.f32 0.0, %v289
    %v291 = vpop.f32.mrf.mxu0
    %v292 = vpop.f32.mrf.mxu0
    %v293 = vadd.f32 0.0, %v292
    %v294 = vpop.f32.mrf.mxu0
    %295 = vmatprep.mubr.bf16.mxu0 0
    %296 = vmatmul.mubr.bf16.gmra.mxu0 %v185
    %v297 = vpop.f32.mrf.mxu0
    %v298 = vadd.f32 0.0, %v297
    %v299 = vpop.f32.mrf.mxu0
    %v300 = vpop.f32.mrf.mxu0
    %v301 = vadd.f32 0.0, %v300
    %v302 = vpop.f32.mrf.mxu0
    %303 = vmatprep.mubr.bf16.mxu0 0
    %304 = vmatmul.mubr.bf16.gmra.mxu0 %v186
    %v305 = vpop.f32.mrf.mxu0
    %v306 = vadd.f32 0.0, %v305
    %v307 = vpop.f32.mrf.mxu0
    %v308 = vpop.f32.mrf.mxu0
    %v309 = vadd.f32 0.0, %v308
    %v310 = vpop.f32.mrf.mxu0
    %311 = vmatprep.mubr.bf16.mxu0 0
    %312 = vmatmul.mubr.bf16.gmra.mxu0 %v187
    %v313 = vpop.f32.mrf.mxu0
    %v314 = vadd.f32 0.0, %v313
    %v315 = vpop.f32.mrf.mxu0
    %v316 = vpop.f32.mrf.mxu0
    %v317 = vadd.f32 0.0, %v316
    %v318 = vpop.f32.mrf.mxu0
    %319 = vmatprep.mubr.bf16.mxu0 0
    %320 = vmatmul.mubr.bf16.gmra.mxu0 %v188
    %v321 = vpop.f32.mrf.mxu0
    %v322 = vadd.f32 0.0, %v321
    %v323 = vpop.f32.mrf.mxu0
    %v324 = vpop.f32.mrf.mxu0
    %v325 = vadd.f32 0.0, %v324
    %v326 = vpop.f32.mrf.mxu0
    %327 = vmatprep.mubr.bf16.mxu0 0
    %328 = vmatmul.mubr.bf16.gmra.mxu0 %v189
    %v329 = vpop.f32.mrf.mxu0
    %v330 = vadd.f32 0.0, %v329
    %v331 = vpop.f32.mrf.mxu0
    %v332 = vpop.f32.mrf.mxu0
    %v333 = vadd.f32 0.0, %v332
    %v334 = vpop.f32.mrf.mxu0
    %335 = vmatprep.mubr.bf16.mxu0 0
    %336 = vmatmul.mubr.bf16.gmra.mxu0 %v190
    %v337 = vpop.f32.mrf.mxu0
    %v338 = vadd.f32 0.0, %v337
    %v339 = vpop.f32.mrf.mxu0
    %v340 = vpop.f32.mrf.mxu0
    %v341 = vadd.f32 0.0, %v340
    %v342 = vpop.f32.mrf.mxu0
    %343 = vdwg.mxu0
    %v344 = vadd.f32 %v103, %v282
    %v345 = vadd.f32 %v104, %v285
    %v346 = vadd.f32 %v105, %v290
    %v347 = vadd.f32 %v106, %v293
    %v348 = vadd.f32 %v107, %v298
    %v349 = vadd.f32 %v108, %v301
    %v350 = vadd.f32 %v109, %v306
    %v351 = vadd.f32 %v110, %v309
    %v352 = vadd.f32 %v111, %v314
    %v353 = vadd.f32 %v112, %v317
    %v354 = vadd.f32 %v113, %v322
    %v355 = vadd.f32 %v114, %v325
    %v356 = vadd.f32 %v115, %v330
    %v357 = vadd.f32 %v116, %v333
    %v358 = vadd.f32 %v117, %v338
    %v359 = vadd.f32 %v118, %v341
    %360 = vst [vmem:[#allocation2] sm:$0xff] %v344
    %361 = vst [vmem:[#allocation2 + $0x8] sm:$0xff] %v345
    %362 = vst [vmem:[#allocation2 + $0x10] sm:$0xff] %v346
    %363 = vst [vmem:[#allocation2 + $0x18] sm:$0xff] %v347
    %364 = vst [vmem:[#allocation2 + $0x20] sm:$0xff] %v348
    %365 = vst [vmem:[#allocation2 + $0x28] sm:$0xff] %v349
    %366 = vst [vmem:[#allocation2 + $0x30] sm:$0xff] %v350
    %367 = vst [vmem:[#allocation2 + $0x38] sm:$0xff] %v351
    %368 = vst [vmem:[#allocation2 + $0x40] sm:$0xff] %v352
    %369 = vst [vmem:[#allocation2 + $0x48] sm:$0xff] %v353
    %370 = vst [vmem:[#allocation2 + $0x50] sm:$0xff] %v354
    %371 = vst [vmem:[#allocation2 + $0x58] sm:$0xff] %v355
    %372 = vst [vmem:[#allocation2 + $0x60] sm:$0xff] %v356
    %373 = vst [vmem:[#allocation2 + $0x68] sm:$0xff] %v357
    %374 = vst [vmem:[#allocation2 + $0x70] sm:$0xff] %v358
    %375 = vst [vmem:[#allocation2 + $0x78] sm:$0xff] %v359
    // Predicated region
    $region50: #{tpu_custom_call.1} parent=1 // pred_check
      %p376 = pneg %p83
    $region51: #{tpu_custom_call.1} parent=1 // pred_check_branch
      %378 = sbr.rel (%p376) target = $region53
    $region52: #{tpu_custom_call.1} parent=1 // pred_region
      %v379 = vld [vmem:[#allocation2] sm:$0xff]
      %v380 = vld [vmem:[#allocation2 + $0x8] sm:$0xff]
      %v381 = vld [vmem:[#allocation2 + $0x10] sm:$0xff]
      %v382 = vld [vmem:[#allocation2 + $0x18] sm:$0xff]
      %v383 = vld [vmem:[#allocation2 + $0x20] sm:$0xff]
      %v384 = vld [vmem:[#allocation2 + $0x28] sm:$0xff]
      %v385 = vld [vmem:[#allocation2 + $0x30] sm:$0xff]
      %v386 = vld [vmem:[#allocation2 + $0x38] sm:$0xff]
      %v387 = vld [vmem:[#allocation2 + $0x40] sm:$0xff]
      %v388 = vld [vmem:[#allocation2 + $0x48] sm:$0xff]
      %v389 = vld [vmem:[#allocation2 + $0x50] sm:$0xff]
      %v390 = vld [vmem:[#allocation2 + $0x58] sm:$0xff]
      %v391 = vld [vmem:[#allocation2 + $0x60] sm:$0xff]
      %v392 = vld [vmem:[#allocation2 + $0x68] sm:$0xff]
      %v393 = vld [vmem:[#allocation2 + $0x70] sm:$0xff]
      %v394 = vld [vmem:[#allocation2 + $0x78] sm:$0xff]
      %v395 = vld [vmem:[%s3] sm:$0xff]
      %v396 = vld [vmem:[%s3 + $0x8] sm:$0xff]
      %v397 = vld [vmem:[%s3 + $0x10] sm:$0xff]
      %v398 = vld [vmem:[%s3 + $0x18] sm:$0xff]
      %v399 = vld [vmem:[%s3 + $0x20] sm:$0xff]
      %v400 = vld [vmem:[%s3 + $0x28] sm:$0xff]
      %v401 = vld [vmem:[%s3 + $0x30] sm:$0xff]
      %v402 = vld [vmem:[%s3 + $0x38] sm:$0xff]
      %v403 = vld [vmem:[%s3 + $0x40] sm:$0xff]
      %v404 = vld [vmem:[%s3 + $0x48] sm:$0xff]
      %v405 = vld [vmem:[%s3 + $0x50] sm:$0xff]
      %v406 = vld [vmem:[%s3 + $0x58] sm:$0xff]
      %v407 = vld [vmem:[%s3 + $0x60] sm:$0xff]
      %v408 = vld [vmem:[%s3 + $0x68] sm:$0xff]
      %v409 = vld [vmem:[%s3 + $0x70] sm:$0xff]
      %v410 = vld [vmem:[%s3 + $0x78] sm:$0xff]
      %412 = vset.pattern.permute.xlu0 0
      %413 = vperm.xlu0 %412, %v395
      %v414 = vpop.permute.xlu0 %413
      %417 = vset.pattern.permute.xlu0 0
      %418 = vperm.xlu0 %417, %v396
      %v419 = vpop.permute.xlu0 %418
      %422 = vset.pattern.permute.xlu0 0
      %423 = vperm.xlu0 %422, %v397
      %v424 = vpop.permute.xlu0 %423
      %427 = vset.pattern.permute.xlu0 0
      %428 = vperm.xlu0 %427, %v398
      %v429 = vpop.permute.xlu0 %428
      %432 = vset.pattern.permute.xlu0 0
      %433 = vperm.xlu0 %432, %v399
      %v434 = vpop.permute.xlu0 %433
      %437 = vset.pattern.permute.xlu0 0
      %438 = vperm.xlu0 %437, %v400
      %v439 = vpop.permute.xlu0 %438
      %442 = vset.pattern.permute.xlu0 0
      %443 = vperm.xlu0 %442, %v401
      %v444 = vpop.permute.xlu0 %443
      %447 = vset.pattern.permute.xlu0 0
      %448 = vperm.xlu0 %447, %v402
      %v449 = vpop.permute.xlu0 %448
      %452 = vset.pattern.permute.xlu0 0
      %453 = vperm.xlu0 %452, %v403
      %v454 = vpop.permute.xlu0 %453
      %457 = vset.pattern.permute.xlu0 0
      %458 = vperm.xlu0 %457, %v404
      %v459 = vpop.permute.xlu0 %458
      %462 = vset.pattern.permute.xlu0 0
      %463 = vperm.xlu0 %462, %v405
      %v464 = vpop.permute.xlu0 %463
      %467 = vset.pattern.permute.xlu0 0
      %468 = vperm.xlu0 %467, %v406
      %v469 = vpop.permute.xlu0 %468
      %472 = vset.pattern.permute.xlu0 0
      %473 = vperm.xlu0 %472, %v407
      %v474 = vpop.permute.xlu0 %473
      %477 = vset.pattern.permute.xlu0 0
      %478 = vperm.xlu0 %477, %v408
      %v479 = vpop.permute.xlu0 %478
      %482 = vset.pattern.permute.xlu0 0
      %483 = vperm.xlu0 %482, %v409
      %v484 = vpop.permute.xlu0 %483
      %487 = vset.pattern.permute.xlu0 0
      %488 = vperm.xlu0 %487, %v410
      %v489 = vpop.permute.xlu0 %488
      %v491 = vmul.f32 %v379, %v414
      %v492 = vmul.f32 %v380, %v419
      %v493 = vmul.f32 %v381, %v424
      %v494 = vmul.f32 %v382, %v429
      %v495 = vmul.f32 %v383, %v434
      %v496 = vmul.f32 %v384, %v439
      %v497 = vmul.f32 %v385, %v444
      %v498 = vmul.f32 %v386, %v449
      %v499 = vmul.f32 %v387, %v454
      %v500 = vmul.f32 %v388, %v459
      %v501 = vmul.f32 %v389, %v464
      %v502 = vmul.f32 %v390, %v469
      %v503 = vmul.f32 %v391, %v474
      %v504 = vmul.f32 %v392, %v479
      %v505 = vmul.f32 %v393, %v484
      %v506 = vmul.f32 %v394, %v489
      %v507 = vld [vmem:[#allocation8] sm:$0xff]
      %v508 = vld [vmem:[#allocation8 + $0x8] sm:$0xff]
      %v509 = vld [vmem:[#allocation8 + $0x10] sm:$0xff]
      %v510 = vld [vmem:[#allocation8 + $0x18] sm:$0xff]
      %v511 = vld [vmem:[#allocation8 + $0x20] sm:$0xff]
      %v512 = vld [vmem:[#allocation8 + $0x28] sm:$0xff]
      %v513 = vld [vmem:[#allocation8 + $0x30] sm:$0xff]
      %v514 = vld [vmem:[#allocation8 + $0x38] sm:$0xff]
      %v515 = vld [vmem:[#allocation8 + $0x40] sm:$0xff]
      %v516 = vld [vmem:[#allocation8 + $0x48] sm:$0xff]
      %v517 = vld [vmem:[#allocation8 + $0x50] sm:$0xff]
      %v518 = vld [vmem:[#allocation8 + $0x58] sm:$0xff]
      %v519 = vld [vmem:[#allocation8 + $0x60] sm:$0xff]
      %v520 = vld [vmem:[#allocation8 + $0x68] sm:$0xff]
      %v521 = vld [vmem:[#allocation8 + $0x70] sm:$0xff]
      %v522 = vld [vmem:[#allocation8 + $0x78] sm:$0xff]
      %v523 = vld [vmem:[%s2] sm:$0xff]
      %v524 = vld [vmem:[%s2 + $0x8] sm:$0xff]
      %v525 = vld [vmem:[%s2 + $0x10] sm:$0xff]
      %v526 = vld [vmem:[%s2 + $0x18] sm:$0xff]
      %v527 = vld [vmem:[%s2 + $0x20] sm:$0xff]
      %v528 = vld [vmem:[%s2 + $0x28] sm:$0xff]
      %v529 = vld [vmem:[%s2 + $0x30] sm:$0xff]
      %v530 = vld [vmem:[%s2 + $0x38] sm:$0xff]
      %v531 = vld [vmem:[%s2 + $0x40] sm:$0xff]
      %v532 = vld [vmem:[%s2 + $0x48] sm:$0xff]
      %v533 = vld [vmem:[%s2 + $0x50] sm:$0xff]
      %v534 = vld [vmem:[%s2 + $0x58] sm:$0xff]
      %v535 = vld [vmem:[%s2 + $0x60] sm:$0xff]
      %v536 = vld [vmem:[%s2 + $0x68] sm:$0xff]
      %v537 = vld [vmem:[%s2 + $0x70] sm:$0xff]
      %v538 = vld [vmem:[%s2 + $0x78] sm:$0xff]
      %v539 = vld [vmem:[#allocation9] sm:$0xff]
      %v540 = vld [vmem:[#allocation9 + $0x8] sm:$0xff]
      %v541 = vld [vmem:[#allocation9 + $0x10] sm:$0xff]
      %v542 = vld [vmem:[#allocation9 + $0x18] sm:$0xff]
      %v543 = vld [vmem:[#allocation9 + $0x20] sm:$0xff]
      %v544 = vld [vmem:[#allocation9 + $0x28] sm:$0xff]
      %v545 = vld [vmem:[#allocation9 + $0x30] sm:$0xff]
      %v546 = vld [vmem:[#allocation9 + $0x38] sm:$0xff]
      %v547 = vld [vmem:[#allocation9 + $0x40] sm:$0xff]
      %v548 = vld [vmem:[#allocation9 + $0x48] sm:$0xff]
      %v549 = vld [vmem:[#allocation9 + $0x50] sm:$0xff]
      %v550 = vld [vmem:[#allocation9 + $0x58] sm:$0xff]
      %v551 = vld [vmem:[#allocation9 + $0x60] sm:$0xff]
      %v552 = vld [vmem:[#allocation9 + $0x68] sm:$0xff]
      %v553 = vld [vmem:[#allocation9 + $0x70] sm:$0xff]
      %v554 = vld [vmem:[#allocation9 + $0x78] sm:$0xff]
      %555 = vmatprep.subr.mxu0 0.0
      %556 = vmatpush1.msra.mxu0 %v554
      %557 = vmatprep.subr.mxu0 0.0
      %558 = vmatpush1.msra.mxu0 %v553
      %559 = vmatprep.subr.mxu0 0.0
      %560 = vmatpush1.msra.mxu0 %v552
      %561 = vmatprep.subr.mxu0 0.0
      %562 = vmatpush1.msra.mxu0 %v551
      %563 = vmatprep.subr.mxu0 0.0
      %564 = vmatpush1.msra.mxu0 %v550
      %565 = vmatprep.subr.mxu0 0.0
      %566 = vmatpush1.msra.mxu0 %v549
      %567 = vmatprep.subr.mxu0 0.0
      %568 = vmatpush1.msra.mxu0 %v548
      %569 = vmatprep.subr.mxu0 0.0
      %570 = vmatpush1.msra.mxu0 %v547
      %571 = vmatprep.subr.mxu0 0.0
      %572 = vmatpush1.msra.mxu0 %v546
      %573 = vmatprep.subr.mxu0 0.0
      %574 = vmatpush1.msra.mxu0 %v545
      %575 = vmatprep.subr.mxu0 0.0
      %576 = vmatpush1.msra.mxu0 %v544
      %577 = vmatprep.subr.mxu0 0.0
      %578 = vmatpush1.msra.mxu0 %v543
      %579 = vmatprep.subr.mxu0 0.0
      %580 = vmatpush1.msra.mxu0 %v542
      %581 = vmatprep.subr.mxu0 0.0
      %582 = vmatpush1.msra.mxu0 %v541
      %583 = vmatprep.subr.mxu0 0.0
      %584 = vmatpush1.msra.mxu0 %v540
      %585 = vmatprep.subr.mxu0 0.0
      %586 = vmatpush1.msra.mxu0 %v539
      %587 = vmatprep.subr.mxu0 0.0
      %588 = vmatpush2.msra.mxu0 0.0
      %589 = vmatprep.subr.mxu0 0.0
      %590 = vmatpush2.msra.mxu0 0.0
      %591 = vmatprep.subr.mxu0 0.0
      %592 = vmatpush2.msra.mxu0 0.0
      %593 = vmatprep.subr.mxu0 0.0
      %594 = vmatpush2.msra.mxu0 0.0
      %595 = vmatprep.subr.mxu0 0.0
      %596 = vmatpush2.msra.mxu0 0.0
      %597 = vmatprep.subr.mxu0 0.0
      %598 = vmatpush2.msra.mxu0 0.0
      %599 = vmatprep.subr.mxu0 0.0
      %600 = vmatpush2.msra.mxu0 0.0
      %601 = vmatprep.subr.mxu0 0.0
      %602 = vmatpush2.msra.mxu0 0.0
      %603 = vmatprep.subr.mxu0 0.0
      %604 = vmatpush2.msra.mxu0 0.0
      %605 = vmatprep.subr.mxu0 0.0
      %606 = vmatpush2.msra.mxu0 0.0
      %607 = vmatprep.subr.mxu0 0.0
      %608 = vmatpush2.msra.mxu0 0.0
      %609 = vmatprep.subr.mxu0 0.0
      %610 = vmatpush2.msra.mxu0 0.0
      %611 = vmatprep.subr.mxu0 0.0
      %612 = vmatpush2.msra.mxu0 0.0
      %613 = vmatprep.subr.mxu0 0.0
      %614 = vmatpush2.msra.mxu0 0.0
      %615 = vmatprep.subr.mxu0 0.0
      %616 = vmatpush2.msra.mxu0 0.0
      %617 = vmatprep.subr.mxu0 0.0
      %618 = vmatpush2.msra.mxu0 0.0
      %619 = vmatprep.mubr.f32.mxu0 0.0
      %620 = vmatmul.mubr.f32.gmra.mxu0 %v523
      %v621 = vpop.f32.mrf.mxu0
      %v622 = vadd.f32 0.0, %v621
      %v623 = vpop.f32.mrf.mxu0
      %624 = vmatprep.mubr.f32.mxu0 0.0
      %625 = vmatmul.mubr.f32.gmra.mxu0 %v524
      %v626 = vpop.f32.mrf.mxu0
      %v627 = vadd.f32 0.0, %v626
      %v628 = vpop.f32.mrf.mxu0
      %629 = vmatprep.mubr.f32.mxu0 0.0
      %630 = vmatmul.mubr.f32.gmra.mxu0 %v525
      %v631 = vpop.f32.mrf.mxu0
      %v632 = vadd.f32 0.0, %v631
      %v633 = vpop.f32.mrf.mxu0
      %634 = vmatprep.mubr.f32.mxu0 0.0
      %635 = vmatmul.mubr.f32.gmra.mxu0 %v526
      %v636 = vpop.f32.mrf.mxu0
      %v637 = vadd.f32 0.0, %v636
      %v638 = vpop.f32.mrf.mxu0
      %639 = vmatprep.mubr.f32.mxu0 0.0
      %640 = vmatmul.mubr.f32.gmra.mxu0 %v527
      %v641 = vpop.f32.mrf.mxu0
      %v642 = vadd.f32 0.0, %v641
      %v643 = vpop.f32.mrf.mxu0
      %644 = vmatprep.mubr.f32.mxu0 0.0
      %645 = vmatmul.mubr.f32.gmra.mxu0 %v528
      %v646 = vpop.f32.mrf.mxu0
      %v647 = vadd.f32 0.0, %v646
      %v648 = vpop.f32.mrf.mxu0
      %649 = vmatprep.mubr.f32.mxu0 0.0
      %650 = vmatmul.mubr.f32.gmra.mxu0 %v529
      %v651 = vpop.f32.mrf.mxu0
      %v652 = vadd.f32 0.0, %v651
      %v653 = vpop.f32.mrf.mxu0
      %654 = vmatprep.mubr.f32.mxu0 0.0
      %655 = vmatmul.mubr.f32.gmra.mxu0 %v530
      %v656 = vpop.f32.mrf.mxu0
      %v657 = vadd.f32 0.0, %v656
      %v658 = vpop.f32.mrf.mxu0
      %659 = vmatprep.mubr.f32.mxu0 0.0
      %660 = vmatmul.mubr.f32.gmra.mxu0 %v531
      %v661 = vpop.f32.mrf.mxu0
      %v662 = vadd.f32 0.0, %v661
      %v663 = vpop.f32.mrf.mxu0
      %664 = vmatprep.mubr.f32.mxu0 0.0
      %665 = vmatmul.mubr.f32.gmra.mxu0 %v532
      %v666 = vpop.f32.mrf.mxu0
      %v667 = vadd.f32 0.0, %v666
      %v668 = vpop.f32.mrf.mxu0
      %669 = vmatprep.mubr.f32.mxu0 0.0
      %670 = vmatmul.mubr.f32.gmra.mxu0 %v533
      %v671 = vpop.f32.mrf.mxu0
      %v672 = vadd.f32 0.0, %v671
      %v673 = vpop.f32.mrf.mxu0
      %674 = vmatprep.mubr.f32.mxu0 0.0
      %675 = vmatmul.mubr.f32.gmra.mxu0 %v534
      %v676 = vpop.f32.mrf.mxu0
      %v677 = vadd.f32 0.0, %v676
      %v678 = vpop.f32.mrf.mxu0
      %679 = vmatprep.mubr.f32.mxu0 0.0
      %680 = vmatmul.mubr.f32.gmra.mxu0 %v535
      %v681 = vpop.f32.mrf.mxu0
      %v682 = vadd.f32 0.0, %v681
      %v683 = vpop.f32.mrf.mxu0
      %684 = vmatprep.mubr.f32.mxu0 0.0
      %685 = vmatmul.mubr.f32.gmra.mxu0 %v536
      %v686 = vpop.f32.mrf.mxu0
      %v687 = vadd.f32 0.0, %v686
      %v688 = vpop.f32.mrf.mxu0
      %689 = vmatprep.mubr.f32.mxu0 0.0
      %690 = vmatmul.mubr.f32.gmra.mxu0 %v537
      %v691 = vpop.f32.mrf.mxu0
      %v692 = vadd.f32 0.0, %v691
      %v693 = vpop.f32.mrf.mxu0
      %694 = vmatprep.mubr.f32.mxu0 0.0
      %695 = vmatmul.mubr.f32.gmra.mxu0 %v538
      %v696 = vpop.f32.mrf.mxu0
      %v697 = vadd.f32 0.0, %v696
      %v698 = vpop.f32.mrf.mxu0
      %699 = vdwg.mxu0
      %700 = vmatprep.subr.mxu0 0.0
      %701 = vmatpush1.msra.mxu0 %v522
      %702 = vmatprep.subr.mxu0 0.0
      %703 = vmatpush1.msra.mxu0 %v521
      %704 = vmatprep.subr.mxu0 0.0
      %705 = vmatpush1.msra.mxu0 %v520
      %706 = vmatprep.subr.mxu0 0.0
      %707 = vmatpush1.msra.mxu0 %v519
      %708 = vmatprep.subr.mxu0 0.0
      %709 = vmatpush1.msra.mxu0 %v518
      %710 = vmatprep.subr.mxu0 0.0
      %711 = vmatpush1.msra.mxu0 %v517
      %712 = vmatprep.subr.mxu0 0.0
      %713 = vmatpush1.msra.mxu0 %v516
      %714 = vmatprep.subr.mxu0 0.0
      %715 = vmatpush1.msra.mxu0 %v515
      %716 = vmatprep.subr.mxu0 0.0
      %717 = vmatpush1.msra.mxu0 %v514
      %718 = vmatprep.subr.mxu0 0.0
      %719 = vmatpush1.msra.mxu0 %v513
      %720 = vmatprep.subr.mxu0 0.0
      %721 = vmatpush1.msra.mxu0 %v512
      %722 = vmatprep.subr.mxu0 0.0
      %723 = vmatpush1.msra.mxu0 %v511
      %724 = vmatprep.subr.mxu0 0.0
      %725 = vmatpush1.msra.mxu0 %v510
      %726 = vmatprep.subr.mxu0 0.0
      %727 = vmatpush1.msra.mxu0 %v509
      %728 = vmatprep.subr.mxu0 0.0
      %729 = vmatpush1.msra.mxu0 %v508
      %730 = vmatprep.subr.mxu0 0.0
      %731 = vmatpush1.msra.mxu0 %v507
      %732 = vmatprep.subr.mxu0 0.0
      %733 = vmatpush2.msra.mxu0 0.0
      %734 = vmatprep.subr.mxu0 0.0
      %735 = vmatpush2.msra.mxu0 0.0
      %736 = vmatprep.subr.mxu0 0.0
      %737 = vmatpush2.msra.mxu0 0.0
      %738 = vmatprep.subr.mxu0 0.0
      %739 = vmatpush2.msra.mxu0 0.0
      %740 = vmatprep.subr.mxu0 0.0
      %741 = vmatpush2.msra.mxu0 0.0
      %742 = vmatprep.subr.mxu0 0.0
      %743 = vmatpush2.msra.mxu0 0.0
      %744 = vmatprep.subr.mxu0 0.0
      %745 = vmatpush2.msra.mxu0 0.0
      %746 = vmatprep.subr.mxu0 0.0
      %747 = vmatpush2.msra.mxu0 0.0
      %748 = vmatprep.subr.mxu0 0.0
      %749 = vmatpush2.msra.mxu0 0.0
      %750 = vmatprep.subr.mxu0 0.0
      %751 = vmatpush2.msra.mxu0 0.0
      %752 = vmatprep.subr.mxu0 0.0
      %753 = vmatpush2.msra.mxu0 0.0
      %754 = vmatprep.subr.mxu0 0.0
      %755 = vmatpush2.msra.mxu0 0.0
      %756 = vmatprep.subr.mxu0 0.0
      %757 = vmatpush2.msra.mxu0 0.0
      %758 = vmatprep.subr.mxu0 0.0
      %759 = vmatpush2.msra.mxu0 0.0
      %760 = vmatprep.subr.mxu0 0.0
      %761 = vmatpush2.msra.mxu0 0.0
      %762 = vmatprep.subr.mxu0 0.0
      %763 = vmatpush2.msra.mxu0 0.0
      %764 = vmatprep.mubr.f32.mxu0 0.0
      %765 = vmatmul.mubr.f32.gmra.mxu0 %v491
      %v766 = vpop.f32.mrf.mxu0
      %v767 = vadd.f32 %v622, %v766
      %v768 = vpop.f32.mrf.mxu0
      %769 = vmatprep.mubr.f32.mxu0 0.0
      %770 = vmatmul.mubr.f32.gmra.mxu0 %v492
      %v771 = vpop.f32.mrf.mxu0
      %v772 = vadd.f32 %v627, %v771
      %v773 = vpop.f32.mrf.mxu0
      %774 = vmatprep.mubr.f32.mxu0 0.0
      %775 = vmatmul.mubr.f32.gmra.mxu0 %v493
      %v776 = vpop.f32.mrf.mxu0
      %v777 = vadd.f32 %v632, %v776
      %v778 = vpop.f32.mrf.mxu0
      %779 = vmatprep.mubr.f32.mxu0 0.0
      %780 = vmatmul.mubr.f32.gmra.mxu0 %v494
      %v781 = vpop.f32.mrf.mxu0
      %v782 = vadd.f32 %v637, %v781
      %v783 = vpop.f32.mrf.mxu0
      %784 = vmatprep.mubr.f32.mxu0 0.0
      %785 = vmatmul.mubr.f32.gmra.mxu0 %v495
      %v786 = vpop.f32.mrf.mxu0
      %v787 = vadd.f32 %v642, %v786
      %v788 = vpop.f32.mrf.mxu0
      %789 = vmatprep.mubr.f32.mxu0 0.0
      %790 = vmatmul.mubr.f32.gmra.mxu0 %v496
      %v791 = vpop.f32.mrf.mxu0
      %v792 = vadd.f32 %v647, %v791
      %v793 = vpop.f32.mrf.mxu0
      %794 = vmatprep.mubr.f32.mxu0 0.0
      %795 = vmatmul.mubr.f32.gmra.mxu0 %v497
      %v796 = vpop.f32.mrf.mxu0
      %v797 = vadd.f32 %v652, %v796
      %v798 = vpop.f32.mrf.mxu0
      %799 = vmatprep.mubr.f32.mxu0 0.0
      %800 = vmatmul.mubr.f32.gmra.mxu0 %v498
      %v801 = vpop.f32.mrf.mxu0
      %v802 = vadd.f32 %v657, %v801
      %v803 = vpop.f32.mrf.mxu0
      %804 = vmatprep.mubr.f32.mxu0 0.0
      %805 = vmatmul.mubr.f32.gmra.mxu0 %v499
      %v806 = vpop.f32.mrf.mxu0
      %v807 = vadd.f32 %v662, %v806
      %v808 = vpop.f32.mrf.mxu0
      %809 = vmatprep.mubr.f32.mxu0 0.0
      %810 = vmatmul.mubr.f32.gmra.mxu0 %v500
      %v811 = vpop.f32.mrf.mxu0
      %v812 = vadd.f32 %v667, %v811
      %v813 = vpop.f32.mrf.mxu0
      %814 = vmatprep.mubr.f32.mxu0 0.0
      %815 = vmatmul.mubr.f32.gmra.mxu0 %v501
      %v816 = vpop.f32.mrf.mxu0
      %v817 = vadd.f32 %v672, %v816
      %v818 = vpop.f32.mrf.mxu0
      %819 = vmatprep.mubr.f32.mxu0 0.0
      %820 = vmatmul.mubr.f32.gmra.mxu0 %v502
      %v821 = vpop.f32.mrf.mxu0
      %v822 = vadd.f32 %v677, %v821
      %v823 = vpop.f32.mrf.mxu0
      %824 = vmatprep.mubr.f32.mxu0 0.0
      %825 = vmatmul.mubr.f32.gmra.mxu0 %v503
      %v826 = vpop.f32.mrf.mxu0
      %v827 = vadd.f32 %v682, %v826
      %v828 = vpop.f32.mrf.mxu0
      %829 = vmatprep.mubr.f32.mxu0 0.0
      %830 = vmatmul.mubr.f32.gmra.mxu0 %v504
      %v831 = vpop.f32.mrf.mxu0
      %v832 = vadd.f32 %v687, %v831
      %v833 = vpop.f32.mrf.mxu0
      %834 = vmatprep.mubr.f32.mxu0 0.0
      %835 = vmatmul.mubr.f32.gmra.mxu0 %v505
      %v836 = vpop.f32.mrf.mxu0
      %v837 = vadd.f32 %v692, %v836
      %v838 = vpop.f32.mrf.mxu0
      %839 = vmatprep.mubr.f32.mxu0 0.0
      %840 = vmatmul.mubr.f32.gmra.mxu0 %v506
      %v841 = vpop.f32.mrf.mxu0
      %v842 = vadd.f32 %v697, %v841
      %v843 = vpop.f32.mrf.mxu0
      %844 = vdwg.mxu0
      %v845 = vld [vmem:[%s6] sm:$0x1]
      %v847 = vlaneseq
      %v848 = vshrl.u32 %v847, 7
      %v849 = vsub.s32 0, %v848
      %v850 = vrot.slane %v845, %v849
      %v852 = vadd.f32 %v767, %v850
      %v853 = vadd.f32 %v772, %v850
      %v854 = vadd.f32 %v777, %v850
      %v855 = vadd.f32 %v782, %v850
      %v856 = vadd.f32 %v787, %v850
      %v857 = vadd.f32 %v792, %v850
      %v858 = vadd.f32 %v797, %v850
      %v859 = vadd.f32 %v802, %v850
      %v860 = vadd.f32 %v807, %v850
      %v861 = vadd.f32 %v812, %v850
      %v862 = vadd.f32 %v817, %v850
      %v863 = vadd.f32 %v822, %v850
      %v864 = vadd.f32 %v827, %v850
      %v865 = vadd.f32 %v832, %v850
      %v866 = vadd.f32 %v837, %v850
      %v867 = vadd.f32 %v842, %v850
      %v868 = vmax.f32 %v852, 0.0
      %v869 = vmax.f32 %v853, 0.0
      %v870 = vmax.f32 %v854, 0.0
      %v871 = vmax.f32 %v855, 0.0
      %v872 = vmax.f32 %v856, 0.0
      %v873 = vmax.f32 %v857, 0.0
      %v874 = vmax.f32 %v858, 0.0
      %v875 = vmax.f32 %v859, 0.0
      %v876 = vmax.f32 %v860, 0.0
      %v877 = vmax.f32 %v861, 0.0
      %v878 = vmax.f32 %v862, 0.0
      %v879 = vmax.f32 %v863, 0.0
      %v880 = vmax.f32 %v864, 0.0
      %v881 = vmax.f32 %v865, 0.0
      %v882 = vmax.f32 %v866, 0.0
      %v883 = vmax.f32 %v867, 0.0
      %884 = vst [vmem:[#allocation11] sm:$0xff] %v868
      %885 = vst [vmem:[#allocation11 + $0x8] sm:$0xff] %v869
      %886 = vst [vmem:[#allocation11 + $0x10] sm:$0xff] %v870
      %887 = vst [vmem:[#allocation11 + $0x18] sm:$0xff] %v871
      %888 = vst [vmem:[#allocation11 + $0x20] sm:$0xff] %v872
      %889 = vst [vmem:[#allocation11 + $0x28] sm:$0xff] %v873
      %890 = vst [vmem:[#allocation11 + $0x30] sm:$0xff] %v874
      %891 = vst [vmem:[#allocation11 + $0x38] sm:$0xff] %v875
      %892 = vst [vmem:[#allocation11 + $0x40] sm:$0xff] %v876
      %893 = vst [vmem:[#allocation11 + $0x48] sm:$0xff] %v877
      %894 = vst [vmem:[#allocation11 + $0x50] sm:$0xff] %v878
      %895 = vst [vmem:[#allocation11 + $0x58] sm:$0xff] %v879
      %896 = vst [vmem:[#allocation11 + $0x60] sm:$0xff] %v880
      %897 = vst [vmem:[#allocation11 + $0x68] sm:$0xff] %v881
      %898 = vst [vmem:[#allocation11 + $0x70] sm:$0xff] %v882
      %899 = vst [vmem:[#allocation11 + $0x78] sm:$0xff] %v883
    $region53: #{tpu_custom_call.1} parent=1 // pred_fallthru
      _
    // Predicated region
    $region54: #{tpu_custom_call.1} parent=1 // pred_check
      _
    $region55: #{tpu_custom_call.1} parent=1 // pred_check_branch
      %901 = sbr.rel (0) target = $region57
    $region56: #{tpu_custom_call.1} parent=1 // pred_region
      %s903 = ssub.s32 2048, 2048
      %904 = vsyncadd [#allocation5], %s903
      %s905 = sshll.u32 [#allocation11], 4
      %s906 = int_to_ptr.vmem [resolvable:$true] %s905
      %911 = dma.vmem_to_hbm [thread:$0]  %s906, 2048, %s7, [#allocation5], 128, 128, 8
    $region57: #{tpu_custom_call.1} parent=1 // pred_fallthru
      _
    // Predicated region
    $region58: #{tpu_custom_call.1} parent=1 // pred_check
      _
    $region59: #{tpu_custom_call.1} parent=1 // pred_check_branch
      %913 = sbr.rel (0) target = $region61
    $region60: #{tpu_custom_call.1} parent=1 // pred_region
      %914 = dma.done [#allocation5], 2048
    $region61: #{tpu_custom_call.1} parent=1 // pred_fallthru
      _
    %915 = vsyncpa [#allocation4], 1
    %916 = vsyncpa [#allocation7], 1
    %917 = vsyncpa [#allocation10], 1
    %918 = vsyncpa [#allocation5], 1

</llo_original>
